<compile_context>
chip_gen: v5e
topology: v5e:2x2
jax: 0.10.0
libtpu: 0.0.40
codegen_flags: <defaults>
</compile_context>

<pallas_src>
import math
from functools import partial

import jax
import jax.numpy as jnp
from jax import lax
from jax.experimental import pallas as pl
from jax.experimental.pallas import tpu as pltpu


def _round_up(v, m):
    return (v + m - 1) // m * m


def _choose_bblk(B, N):
    """Fold batch images so M = Bblk*N >= 256 for the MXU, while keeping at least
    4 grid steps (>= 2 per TensorCore on v7x) whenever the batch allows."""
    bblk = min(B, max(1, -(-256 // N)))
    min_steps = 4 if B >= 4 else B
    while bblk > 1 and (B // bblk) < min_steps:
        bblk -= 1
    while B % bblk != 0:
        bblk -= 1
    return bblk


def _mlp_kernel(x_ref, w1_ref, b1_ref, wdw_ref, bdw_ref, w2_ref, b2_ref,
                o_ref, hbuf_ref, *maybe_gbuf,
                H, W, Bblk, pad_rows, aligned, fc2_per_image):
    N = H * W
    Cin = x_ref.shape[-1]
    Hp = w1_ref.shape[-1]
    Cop = w2_ref.shape[-1]
    gbuf_ref = maybe_gbuf[0] if maybe_gbuf else None

    # ---- loop invariants (hoisted) -----------------------------------------
    col = lax.broadcasted_iota(jnp.int32, (N, 1), 0) % W
    mask_l = col >= 1                       # dx = -1 in-bounds columns
    mask_r = col <= (W - 2)                 # dx = +1 in-bounds columns

    wdw_all = wdw_ref[...]                  # (16, Hp) f32, row k = ky*3 + kx
    wrow = [wdw_all[k:k + 1, :] for k in range(9)]
    bdw = bdw_ref[...]                      # (1, Hp)
    b1 = b1_ref[...]                        # (1, Hp)
    b2 = b2_ref[...]                        # (1, Cop)
    w1 = w1_ref[...]                        # (Cin, Hp) bf16
    w2 = w2_ref[...]                        # (Hp, Cop) bf16

    # Zero the vertical halo rows once per grid step; per-image data stores never
    # touch them.  (Kept per-step, not program_id==0, so it stays correct when the
    # grid axis is megacore-sharded across TensorCores.)
    zeros_halo = jnp.zeros((pad_rows, Hp), jnp.float32)
    hbuf_ref[pl.ds(0, pad_rows), :] = zeros_halo
    hbuf_ref[pl.ds(pad_rows + N, pad_rows), :] = zeros_halo

    def dwconv_gelu(h):
        """h: (N, Hp) f32 fc1 output for one image -> GELU(dwconv3x3(h)) f32."""
        hbuf_ref[pl.ds(pad_rows, N), :] = h

        if aligned:
            # Sublane-aligned vertical taps; dx-hoisted: vertical sum per dx first,
            # then one XLU roll + one column mask per nonzero dx.
            tap_u = hbuf_ref[pl.ds(pad_rows - W, N), :]     # dy = -1
            tap_d = hbuf_ref[pl.ds(pad_rows + W, N), :]     # dy = +1
            taps = (tap_u, h, tap_d)

            def vsum(dx):
                s = None
                for j in range(3):                           # j = dy + 1
                    t = taps[j] * wrow[j * 3 + (dx + 1)]
                    s = t if s is None else s + t
                return s

            acc = vsum(0)
            # dx = -1: out[i] needs sum[i-1]  -> roll by +1; wrap lands on x==0 (masked)
            acc = acc + jnp.where(mask_l, pltpu.roll(vsum(-1), shift=1, axis=0), 0.0)
            # dx = +1: out[i] needs sum[i+1]  -> roll by N-1 (== -1 mod N, non-negative);
            # wrap lands on x==W-1 (masked)
            acc = acc + jnp.where(mask_r, pltpu.roll(vsum(1), shift=N - 1, axis=0), 0.0)
        else:
            # Fallback for W % 8 != 0: directly read dx-shifted (unaligned) slices.
            def vsum(dx):
                s = None
                for j, dy in enumerate((-1, 0, 1)):
                    if dy == 0 and dx == 0:
                        tap = h
                    else:
                        tap = hbuf_ref[pl.ds(pad_rows + dy * W + dx, N), :]
                    t = tap * wrow[j * 3 + (dx + 1)]
                    s = t if s is None else s + t
                return s

            acc = vsum(0)
            acc = acc + jnp.where(mask_l, vsum(-1), 0.0)
            acc = acc + jnp.where(mask_r, vsum(1), 0.0)

        acc = acc + bdw
        # tanh GELU -> EUP slot (exact erf would be a long VALU polynomial).
        return jax.nn.gelu(acc, approximate=True)

    if fc2_per_image:
        # Large N: per-image fc1/conv/GELU/fc2; the per-image dot already fills
        # the MXU and overlaps with the next image's VPU/XLU conv work.
        for b in range(Bblk):
            xb = x_ref[b].astype(jnp.bfloat16)                       # (N, Cin)
            h = jnp.dot(xb, w1, preferred_element_type=jnp.float32) + b1
            g = dwconv_gelu(h)
            out_b = jnp.dot(g.astype(jnp.bfloat16), w2,
                            preferred_element_type=jnp.float32) + b2
            o_ref[b] = out_b.astype(o_ref.dtype)
    else:
        # Small N: batched fc1 (fills MXU M), per-image conv+GELU staged in bf16,
        # one batched fc2 (no f32 concatenate pass).
        x = x_ref[...].reshape(Bblk * N, Cin).astype(jnp.bfloat16)
        h_all = jnp.dot(x, w1, preferred_element_type=jnp.float32) + b1
        for b in range(Bblk):
            g = dwconv_gelu(h_all[b * N:(b + 1) * N, :])
            gbuf_ref[pl.ds(b * N, N), :] = g.astype(jnp.bfloat16)
        out = jnp.dot(gbuf_ref[...], w2, preferred_element_type=jnp.float32) + b2
        o_ref[...] = out.reshape(Bblk, N, Cop).astype(o_ref.dtype)


def mlp_pallas(x, w1, b1, wdw, bdw, w2, b2, H, W, batch_block=None):
    """x: (B, N, Cin) float32, N == H*W.  Returns (B, N, Cout) float32."""
    B, N, Cin = x.shape
    Hid = w1.shape[1]
    Cout = w2.shape[1]
    assert N == H * W

    Hp = _round_up(Hid, 128)
    Cop = Cout if Cout % 128 == 0 else _round_up(Cout, 128)

    # Weights/biases lane-padded on the hidden/out axes; x stays f32 and unpadded
    # (full-dim block) and is cast to bf16 in-kernel.
    w1p = jnp.pad(w1, ((0, 0), (0, Hp - Hid))).astype(jnp.bfloat16)
    w2p = jnp.pad(w2, ((0, Hp - Hid), (0, Cop - Cout))).astype(jnp.bfloat16)
    b1p = jnp.pad(b1, (0, Hp - Hid)).reshape(1, Hp).astype(jnp.float32)
    bdwp = jnp.pad(bdw, (0, Hp - Hid)).reshape(1, Hp).astype(jnp.float32)
    b2p = jnp.pad(b2, (0, Cop - Cout)).reshape(1, Cop).astype(jnp.float32)
    # (Hid, 3, 3) -> (9, Hid), row k = ky*3 + kx; sublane-pad to 16 rows.
    wdw2 = jnp.transpose(wdw, (1, 2, 0)).reshape(9, Hid)
    wdwp = jnp.pad(wdw2, ((0, 16 - 9), (0, Hp - Hid))).astype(jnp.float32)

    Bblk = batch_block if batch_block is not None else _choose_bblk(B, N)
    assert B % Bblk == 0
    grid = (B // Bblk,)

    aligned = (W % 8 == 0)
    pad_rows = W if aligned else W + 1
    rows = N + 2 * pad_rows
    fc2_per_image = N >= 256

    scratch_shapes = [pltpu.VMEM((rows, Hp), jnp.float32)]      # per-image conv staging
    if not fc2_per_image:
        scratch_shapes.append(pltpu.VMEM((Bblk * N, Hp), jnp.bfloat16))  # bf16 g staging

    # VMEM budget: double-buffered IO + weights + scratch + live f32 intermediates.
    live_tokens = N if fc2_per_image else Bblk * N
    est = (2 * Bblk * N * Cin * 4
           + 2 * Bblk * N * Cop * 4
           + 2 * (Cin * Hp + Hp * Cop) * 2
           + 2 * (16 * Hp + 2 * Hp + Cop) * 4
           + rows * Hp * 4
           + (0 if fc2_per_image else Bblk * N * Hp * 2)
           + 6 * live_tokens * Hp * 4)
    try:
        vmem_cap = pltpu.get_tpu_info().vmem_capacity_bytes     # generation-aware
    except Exception:
        vmem_cap = 64 << 20                                     # conservative fallback
    ceiling = (vmem_cap // 8) * 7
    vmem_limit = max(32 << 20, min(int(est * 1.5) + (2 << 20), ceiling))

    kernel = partial(_mlp_kernel, H=H, W=W, Bblk=Bblk, pad_rows=pad_rows,
                     aligned=aligned, fc2_per_image=fc2_per_image)

    out = pl.pallas_call(
        kernel,
        out_shape=jax.ShapeDtypeStruct((B, N, Cop), jnp.float32),
        grid=grid,
        in_specs=[
            pl.BlockSpec((Bblk, N, Cin), lambda b: (b, 0, 0)),
            pl.BlockSpec((Cin, Hp), lambda b: (0, 0)),
            pl.BlockSpec((1, Hp), lambda b: (0, 0)),
            pl.BlockSpec((16, Hp), lambda b: (0, 0)),
            pl.BlockSpec((1, Hp), lambda b: (0, 0)),
            pl.BlockSpec((Hp, Cop), lambda b: (0, 0)),
            pl.BlockSpec((1, Cop), lambda b: (0, 0)),
        ],
        out_specs=pl.BlockSpec((Bblk, N, Cop), lambda b: (b, 0, 0)),
        scratch_shapes=scratch_shapes,
        compiler_params=pltpu.CompilerParams(
            dimension_semantics=("parallel",),
            vmem_limit_bytes=vmem_limit),
    )(x.astype(jnp.float32), w1p, b1p, wdwp, bdwp, w2p, b2p)

    if Cop != Cout:
        out = out[..., :Cout]
    return out


def mlp_reference(x, w1, b1, wdw, bdw, w2, b2, H, W):
    """Pure-JAX f32 reference mirroring the PyTorch forward (exact-erf GELU)."""
    B, N, Cin = x.shape
    Hid = w1.shape[1]
    h = x @ w1 + b1                                           # (B, N, Hid)
    h_img = jnp.transpose(h, (0, 2, 1)).reshape(B, Hid, H, W)
    conv = lax.conv_general_dilated(
        h_img, wdw.reshape(Hid, 1, 3, 3),
        window_strides=(1, 1), padding=((1, 1), (1, 1)),
        dimension_numbers=("NCHW", "OIHW", "NCHW"),
        feature_group_count=Hid)
    conv = conv + bdw.reshape(1, Hid, 1, 1)
    h = jnp.transpose(conv.reshape(B, Hid, N), (0, 2, 1))     # (B, N, Hid)
    g = jax.nn.gelu(h, approximate=False)
    return g @ w2 + b2                                        # (B, N, Cout)


if __name__ == "__main__":
    B, H, W = 2, 8, 8
    N = H * W
    Cin, Hid, Cout = 64, 128, 64

    key = jax.random.PRNGKey(0)
    kx, k1, kd, k2 = jax.random.split(key, 4)

    x = jax.random.normal(kx, (B, N, Cin), jnp.float32)

    # fc1 / fc2: trunc_normal(std=0.02) approximated by normal*0.02, biases zero
    w1 = 0.02 * jax.random.normal(k1, (Cin, Hid), jnp.float32)
    b1 = jnp.zeros((Hid,), jnp.float32)
    w2 = 0.02 * jax.random.normal(k2, (Hid, Cout), jnp.float32)
    b2 = jnp.zeros((Cout,), jnp.float32)

    # depthwise conv: normal(0, sqrt(2/fan_out)), fan_out = 3*3*Hid/Hid = 9
    wdw = math.sqrt(2.0 / 9.0) * jax.random.normal(kd, (Hid, 3, 3), jnp.float32)
    bdw = jnp.zeros((Hid,), jnp.float32)

    # Dropout(p=0.0) in the PyTorch module is the identity; nothing to implement.
    out = mlp_pallas(x, w1, b1, wdw, bdw, w2, b2, H, W)
    out = jax.block_until_ready(out)

    ref = mlp_reference(x, w1, b1, wdw, bdw, w2, b2, H, W)
    assert out.shape == (B, N, Cout)
    # bf16 MXU operands + tanh-GELU vs exact-erf reference => loose tolerance.
    assert jnp.allclose(out, ref, atol=5e-2, rtol=5e-2), "mismatch vs reference"

    print("KERNEL_OK")
</pallas_src>

<mosaic_0001>
module attributes {stable_mosaic.version = 11 : i64} {
  func.func @_mlp_kernel(%arg0: i32, %arg1: memref<1x64x64xf32, #tpu.memory_space<vmem>>, %arg2: memref<64x128xbf16, #tpu.memory_space<vmem>>, %arg3: memref<1x128xf32, #tpu.memory_space<vmem>>, %arg4: memref<16x128xf32, #tpu.memory_space<vmem>>, %arg5: memref<1x128xf32, #tpu.memory_space<vmem>>, %arg6: memref<128x128xbf16, #tpu.memory_space<vmem>>, %arg7: memref<1x128xf32, #tpu.memory_space<vmem>>, %arg8: memref<1x64x128xf32, #tpu.memory_space<vmem>>, %arg9: memref<80x128xf32, #tpu.memory_space<vmem>>, %arg10: memref<64x128xbf16, #tpu.memory_space<vmem>>) attributes {dimension_semantics = [#tpu.dimension_semantics<parallel>], iteration_bounds = array<i64: 2>, scalar_prefetch = 0 : i64, scratch_operands = 2 : i64, tpu.core_type = #tpu.core_type<tc>, window_params = [{transform_indices = @transform_0, window_bounds = array<i64: 1, 64, 64>}, {pipeline_mode = #tpu.pipeline_mode<synchronous>, transform_indices = @transform_1, window_bounds = array<i64: 64, 128>}, {pipeline_mode = #tpu.pipeline_mode<synchronous>, transform_indices = @transform_2, window_bounds = array<i64: 1, 128>}, {pipeline_mode = #tpu.pipeline_mode<synchronous>, transform_indices = @transform_3, window_bounds = array<i64: 16, 128>}, {pipeline_mode = #tpu.pipeline_mode<synchronous>, transform_indices = @transform_4, window_bounds = array<i64: 1, 128>}, {pipeline_mode = #tpu.pipeline_mode<synchronous>, transform_indices = @transform_5, window_bounds = array<i64: 128, 128>}, {pipeline_mode = #tpu.pipeline_mode<synchronous>, transform_indices = @transform_6, window_bounds = array<i64: 1, 128>}, {transform_indices = @transform_7, window_bounds = array<i64: 1, 64, 128>}]} {
    %0 = tpu.iota {dimensions = array<i32: 0>} : vector<64x1xi32>
    %c8_i32 = arith.constant 8 : i32
    %c0_i32 = arith.constant 0 : i32
    %1 = arith.cmpi eq, %c8_i32, %c0_i32 : i32
    %c1_i32 = arith.constant 1 : i32
    %2 = arith.select %1, %c1_i32, %c8_i32 : i32
    %3 = vector.broadcast %2 : i32 to vector<64x1xi32>
    %4 = arith.remsi %0, %3 : vector<64x1xi32>
    %c0_i32_0 = arith.constant 0 : i32
    %5 = vector.broadcast %c0_i32_0 : i32 to vector<64x1xi32>
    %6 = arith.cmpi ne, %4, %5 : vector<64x1xi32>
    %c0_i32_1 = arith.constant 0 : i32
    %7 = vector.broadcast %c0_i32_1 : i32 to vector<64x1xi32>
    %8 = arith.cmpi slt, %4, %7 : vector<64x1xi32>
    %c0_i32_2 = arith.constant 0 : i32
    %9 = arith.cmpi slt, %2, %c0_i32_2 : i32
    %10 = vector.broadcast %9 : i1 to vector<64x1xi1>
    %11 = vector.broadcast %10 : vector<64x1xi1> to vector<64x1xi1>
    %12 = arith.xori %8, %11 : vector<64x1xi1>
    %13 = arith.andi %12, %6 : vector<64x1xi1>
    %14 = vector.broadcast %2 : i32 to vector<64x1xi32>
    %15 = arith.addi %4, %14 : vector<64x1xi32>
    %16 = arith.select %13, %15, %4 : vector<64x1xi1>, vector<64x1xi32>
    %c1_i32_3 = arith.constant 1 : i32
    %17 = vector.broadcast %c1_i32_3 : i32 to vector<64x1xi32>
    %18 = arith.cmpi sge, %16, %17 : vector<64x1xi32>
    %c6_i32 = arith.constant 6 : i32
    %19 = vector.broadcast %c6_i32 : i32 to vector<64x1xi32>
    %20 = arith.cmpi sle, %16, %19 : vector<64x1xi32>
    %c0 = arith.constant 0 : index
    %c0_4 = arith.constant 0 : index
    %21 = vector.load %arg4[%c0, %c0_4] : memref<16x128xf32, #tpu.memory_space<vmem>>, vector<16x128xf32>
    %22 = vector.extract_strided_slice %21 {offsets = [0, 0], sizes = [1, 128], strides = [1, 1]} : vector<16x128xf32> to vector<1x128xf32>
    %23 = vector.extract_strided_slice %21 {offsets = [1, 0], sizes = [1, 128], strides = [1, 1]} : vector<16x128xf32> to vector<1x128xf32>
    %24 = vector.extract_strided_slice %21 {offsets = [2, 0], sizes = [1, 128], strides = [1, 1]} : vector<16x128xf32> to vector<1x128xf32>
    %25 = vector.extract_strided_slice %21 {offsets = [3, 0], sizes = [1, 128], strides = [1, 1]} : vector<16x128xf32> to vector<1x128xf32>
    %26 = vector.extract_strided_slice %21 {offsets = [4, 0], sizes = [1, 128], strides = [1, 1]} : vector<16x128xf32> to vector<1x128xf32>
    %27 = vector.extract_strided_slice %21 {offsets = [5, 0], sizes = [1, 128], strides = [1, 1]} : vector<16x128xf32> to vector<1x128xf32>
    %28 = vector.extract_strided_slice %21 {offsets = [6, 0], sizes = [1, 128], strides = [1, 1]} : vector<16x128xf32> to vector<1x128xf32>
    %29 = vector.extract_strided_slice %21 {offsets = [7, 0], sizes = [1, 128], strides = [1, 1]} : vector<16x128xf32> to vector<1x128xf32>
    %30 = vector.extract_strided_slice %21 {offsets = [8, 0], sizes = [1, 128], strides = [1, 1]} : vector<16x128xf32> to vector<1x128xf32>
    %c0_5 = arith.constant 0 : index
    %c0_6 = arith.constant 0 : index
    %31 = vector.load %arg5[%c0_5, %c0_6] : memref<1x128xf32, #tpu.memory_space<vmem>>, vector<1x128xf32>
    %c0_7 = arith.constant 0 : index
    %c0_8 = arith.constant 0 : index
    %32 = vector.load %arg3[%c0_7, %c0_8] : memref<1x128xf32, #tpu.memory_space<vmem>>, vector<1x128xf32>
    %c0_9 = arith.constant 0 : index
    %c0_10 = arith.constant 0 : index
    %33 = vector.load %arg7[%c0_9, %c0_10] : memref<1x128xf32, #tpu.memory_space<vmem>>, vector<1x128xf32>
    %c0_11 = arith.constant 0 : index
    %c0_12 = arith.constant 0 : index
    %34 = vector.load %arg2[%c0_11, %c0_12] : memref<64x128xbf16, #tpu.memory_space<vmem>>, vector<64x128xbf16>
    %c0_13 = arith.constant 0 : index
    %c0_14 = arith.constant 0 : index
    %35 = vector.load %arg6[%c0_13, %c0_14] : memref<128x128xbf16, #tpu.memory_space<vmem>>, vector<128x128xbf16>
    %cst = arith.constant 0.000000e+00 : f32
    %36 = vector.broadcast %cst : f32 to vector<8x128xf32>
    %c0_15 = arith.constant 0 : index
    %c0_16 = arith.constant 0 : index
    %37 = vector.load %arg9[%c0_15, %c0_16] : memref<80x128xf32, #tpu.memory_space<vmem>>, vector<8x128xf32>
    tpu.vector_store %arg9[%c0_15, %c0_16], %36 {strides = array<i32>} : memref<80x128xf32, #tpu.memory_space<vmem>>, vector<8x128xf32>,
    %c72 = arith.constant 72 : index
    %c0_17 = arith.constant 0 : index
    %38 = vector.load %arg9[%c72, %c0_17] : memref<80x128xf32, #tpu.memory_space<vmem>>, vector<8x128xf32>
    tpu.vector_store %arg9[%c72, %c0_17], %36 {strides = array<i32>} : memref<80x128xf32, #tpu.memory_space<vmem>>, vector<8x128xf32>,
    %c0_18 = arith.constant 0 : index
    %c0_19 = arith.constant 0 : index
    %c0_20 = arith.constant 0 : index
    %39 = vector.load %arg1[%c0_18, %c0_19, %c0_20] : memref<1x64x64xf32, #tpu.memory_space<vmem>>, vector<1x64x64xf32>
    %40 = vector.shape_cast %39 : vector<1x64x64xf32> to vector<64x64xf32>
    %41 = arith.truncf %40 : vector<64x64xf32> to vector<64x64xbf16>
    %cst_21 = arith.constant dense<0.000000e+00> : vector<64x128xf32>
    %42 = tpu.matmul %41, %34, %cst_21 {dimension_numbers = #tpu.dot_dimension_numbers<[1], [0], [0], [1], [0, 0, 1, 1], [], []>} : vector<64x64xbf16>, vector<64x128xbf16>, vector<64x128xf32> -> vector<64x128xf32>
    %43 = vector.broadcast %32 : vector<1x128xf32> to vector<64x128xf32>
    %44 = arith.addf %42, %43 : vector<64x128xf32>
    %c8 = arith.constant 8 : index
    %c0_22 = arith.constant 0 : index
    %45 = vector.load %arg9[%c8, %c0_22] : memref<80x128xf32, #tpu.memory_space<vmem>>, vector<64x128xf32>
    tpu.vector_store %arg9[%c8, %c0_22], %44 {strides = array<i32>} : memref<80x128xf32, #tpu.memory_space<vmem>>, vector<64x128xf32>,
    %c0_23 = arith.constant 0 : index
    %c0_24 = arith.constant 0 : index
    %46 = vector.load %arg9[%c0_23, %c0_24] : memref<80x128xf32, #tpu.memory_space<vmem>>, vector<64x128xf32>
    %c16 = arith.constant 16 : index
    %c0_25 = arith.constant 0 : index
    %47 = vector.load %arg9[%c16, %c0_25] : memref<80x128xf32, #tpu.memory_space<vmem>>, vector<64x128xf32>
    %48 = vector.broadcast %23 : vector<1x128xf32> to vector<64x128xf32>
    %49 = arith.mulf %46, %48 : vector<64x128xf32>
    %50 = vector.broadcast %26 : vector<1x128xf32> to vector<64x128xf32>
    %51 = arith.mulf %44, %50 : vector<64x128xf32>
    %52 = arith.addf %49, %51 : vector<64x128xf32>
    %53 = vector.broadcast %29 : vector<1x128xf32> to vector<64x128xf32>
    %54 = arith.mulf %47, %53 : vector<64x128xf32>
    %55 = arith.addf %52, %54 : vector<64x128xf32>
    %56 = vector.broadcast %22 : vector<1x128xf32> to vector<64x128xf32>
    %57 = arith.mulf %46, %56 : vector<64x128xf32>
    %58 = vector.broadcast %25 : vector<1x128xf32> to vector<64x128xf32>
    %59 = arith.mulf %44, %58 : vector<64x128xf32>
    %60 = arith.addf %57, %59 : vector<64x128xf32>
    %61 = vector.broadcast %28 : vector<1x128xf32> to vector<64x128xf32>
    %62 = arith.mulf %47, %61 : vector<64x128xf32>
    %63 = arith.addf %60, %62 : vector<64x128xf32>
    %c1_i32_26 = arith.constant 1 : i32
    %64 = tpu.dynamic_rotate %63 by %c1_i32_26 dim 0 : vector<64x128xf32>, i32 -> vector<64x128xf32>
    %cst_27 = arith.constant 0.000000e+00 : f32
    %65 = vector.shape_cast %18 : vector<64x1xi1> to vector<64x1xi1>
    %66 = vector.broadcast %65 : vector<64x1xi1> to vector<64x128xi1>
    %67 = vector.broadcast %cst_27 : f32 to vector<64x128xf32>
    %68 = arith.select %66, %64, %67 : vector<64x128xi1>, vector<64x128xf32>
    %69 = arith.addf %55, %68 : vector<64x128xf32>
    %70 = vector.broadcast %24 : vector<1x128xf32> to vector<64x128xf32>
    %71 = arith.mulf %46, %70 : vector<64x128xf32>
    %72 = vector.broadcast %27 : vector<1x128xf32> to vector<64x128xf32>
    %73 = arith.mulf %44, %72 : vector<64x128xf32>
    %74 = arith.addf %71, %73 : vector<64x128xf32>
    %75 = vector.broadcast %30 : vector<1x128xf32> to vector<64x128xf32>
    %76 = arith.mulf %47, %75 : vector<64x128xf32>
    %77 = arith.addf %74, %76 : vector<64x128xf32>
    %c63_i32 = arith.constant 63 : i32
    %78 = tpu.dynamic_rotate %77 by %c63_i32 dim 0 : vector<64x128xf32>, i32 -> vector<64x128xf32>
    %cst_28 = arith.constant 0.000000e+00 : f32
    %79 = vector.shape_cast %20 : vector<64x1xi1> to vector<64x1xi1>
    %80 = vector.broadcast %79 : vector<64x1xi1> to vector<64x128xi1>
    %81 = vector.broadcast %cst_28 : f32 to vector<64x128xf32>
    %82 = arith.select %80, %78, %81 : vector<64x128xi1>, vector<64x128xf32>
    %83 = arith.addf %69, %82 : vector<64x128xf32>
    %84 = vector.broadcast %31 : vector<1x128xf32> to vector<64x128xf32>
    %85 = arith.addf %83, %84 : vector<64x128xf32>
    %86 = arith.mulf %85, %85 : vector<64x128xf32>
    %87 = arith.mulf %85, %86 : vector<64x128xf32>
    %cst_29 = arith.constant 4.471500e-02 : f32
    %88 = vector.broadcast %cst_29 : f32 to vector<64x128xf32>
    %89 = arith.mulf %88, %87 : vector<64x128xf32>
    %90 = arith.addf %85, %89 : vector<64x128xf32>
    %cst_30 = arith.constant 0.797884583 : f32
    %91 = vector.broadcast %cst_30 : f32 to vector<64x128xf32>
    %92 = arith.mulf %91, %90 : vector<64x128xf32>
    %93 = math.tanh %92 : vector<64x128xf32>
    %cst_31 = arith.constant 1.000000e+00 : f32
    %94 = vector.broadcast %cst_31 : f32 to vector<64x128xf32>
    %95 = arith.addf %94, %93 : vector<64x128xf32>
    %cst_32 = arith.constant 5.000000e-01 : f32
    %96 = vector.broadcast %cst_32 : f32 to vector<64x128xf32>
    %97 = arith.mulf %96, %95 : vector<64x128xf32>
    %98 = arith.mulf %85, %97 : vector<64x128xf32>
    %99 = arith.truncf %98 : vector<64x128xf32> to vector<64x128xbf16>
    %c0_33 = arith.constant 0 : index
    %c0_34 = arith.constant 0 : index
    %100 = vector.load %arg10[%c0_33, %c0_34] : memref<64x128xbf16, #tpu.memory_space<vmem>>, vector<64x128xbf16>
    tpu.vector_store %arg10[%c0_33, %c0_34], %99 {strides = array<i32>} : memref<64x128xbf16, #tpu.memory_space<vmem>>, vector<64x128xbf16>,
    %c0_35 = arith.constant 0 : index
    %c0_36 = arith.constant 0 : index
    %101 = vector.load %arg10[%c0_35, %c0_36] : memref<64x128xbf16, #tpu.memory_space<vmem>>, vector<64x128xbf16>
    %cst_37 = arith.constant dense<0.000000e+00> : vector<64x128xf32>
    %102 = tpu.matmul %101, %35, %cst_37 {dimension_numbers = #tpu.dot_dimension_numbers<[1], [0], [0], [1], [0, 0, 1, 1], [], []>} : vector<64x128xbf16>, vector<128x128xbf16>, vector<64x128xf32> -> vector<64x128xf32>
    %103 = vector.broadcast %33 : vector<1x128xf32> to vector<64x128xf32>
    %104 = arith.addf %102, %103 : vector<64x128xf32>
    %105 = vector.shape_cast %104 : vector<64x128xf32> to vector<1x64x128xf32>
    %c0_38 = arith.constant 0 : index
    %c0_39 = arith.constant 0 : index
    %c0_40 = arith.constant 0 : index
    %106 = vector.load %arg8[%c0_38, %c0_39, %c0_40] : memref<1x64x128xf32, #tpu.memory_space<vmem>>, vector<1x64x128xf32>
    tpu.vector_store %arg8[%c0_38, %c0_39, %c0_40], %105 {strides = array<i32>} : memref<1x64x128xf32, #tpu.memory_space<vmem>>, vector<1x64x128xf32>,
    return
  }
  func.func @transform_0(%arg0: i32) -> (i32, i32, i32) {
    %c0_i32 = arith.constant 0 : i32
    %c0_i32_0 = arith.constant 0 : i32
    %c0_i32_1 = arith.constant 0 : i32
    return %arg0, %c0_i32, %c0_i32_0 : i32, i32, i32
  }
  func.func @transform_1(%arg0: i32) -> (i32, i32) {
    %c0_i32 = arith.constant 0 : i32
    %c0_i32_0 = arith.constant 0 : i32
    %c0_i32_1 = arith.constant 0 : i32
    return %c0_i32, %c0_i32_0 : i32, i32
  }
  func.func @transform_2(%arg0: i32) -> (i32, i32) {
    %c0_i32 = arith.constant 0 : i32
    %c0_i32_0 = arith.constant 0 : i32
    %c0_i32_1 = arith.constant 0 : i32
    return %c0_i32, %c0_i32_0 : i32, i32
  }
  func.func @transform_3(%arg0: i32) -> (i32, i32) {
    %c0_i32 = arith.constant 0 : i32
    %c0_i32_0 = arith.constant 0 : i32
    %c0_i32_1 = arith.constant 0 : i32
    return %c0_i32, %c0_i32_0 : i32, i32
  }
  func.func @transform_4(%arg0: i32) -> (i32, i32) {
    %c0_i32 = arith.constant 0 : i32
    %c0_i32_0 = arith.constant 0 : i32
    %c0_i32_1 = arith.constant 0 : i32
    return %c0_i32, %c0_i32_0 : i32, i32
  }
  func.func @transform_5(%arg0: i32) -> (i32, i32) {
    %c0_i32 = arith.constant 0 : i32
    %c0_i32_0 = arith.constant 0 : i32
    %c0_i32_1 = arith.constant 0 : i32
    return %c0_i32, %c0_i32_0 : i32, i32
  }
  func.func @transform_6(%arg0: i32) -> (i32, i32) {
    %c0_i32 = arith.constant 0 : i32
    %c0_i32_0 = arith.constant 0 : i32
    %c0_i32_1 = arith.constant 0 : i32
    return %c0_i32, %c0_i32_0 : i32, i32
  }
  func.func @transform_7(%arg0: i32) -> (i32, i32, i32) {
    %c0_i32 = arith.constant 0 : i32
    %c0_i32_0 = arith.constant 0 : i32
    %c0_i32_1 = arith.constant 0 : i32
    return %arg0, %c0_i32, %c0_i32_0 : i32, i32, i32
  }
}

</mosaic_0001>

<llo_original>
// kernel: tpu_custom_call.1
$region0: #{tpu_custom_call.1}
  #allocation0 [shape = 'u32[]', space=smem, size = 0x4, offset = 0x4, fixed_abs, tag = 'smem constant byte address 0x4 - core index']
  #allocation1 [shape = 'u32[72,128]{1,0:T(1,128)}', space=vmem, size = 0x9000, scoped, tag = 'internal scratch']
  #allocation2 [shape = 'f32[80,128]{1,0:T(8,128)}', space=vmem, size = 0xa000, scoped, tag = 'scratch operand']
  #allocation3 [shape = 'bf16[64,128]{1,0:T(8,128)(2,1)}', space=vmem, size = 0x4000, scoped, tag = 'scratch operand']
  %s0 = inlined_call_operand.hbm [shape: f32[2,64,64], index: 0, kind: input, shape index: {}]
  %s1 = inlined_call_operand.hbm [shape: bf16[64,128], index: 1, kind: input, shape index: {}]
  %s2 = inlined_call_operand.vmem [shape: f32[1,128], index: 2, kind: input, shape index: {}]
  %s3 = inlined_call_operand.hbm [shape: f32[16,128], index: 3, kind: input, shape index: {}]
  %s4 = inlined_call_operand.vmem [shape: f32[1,128], index: 4, kind: input, shape index: {}]
  %s5 = inlined_call_operand.hbm [shape: bf16[128,128], index: 5, kind: input, shape index: {}]
  %s6 = inlined_call_operand.vmem [shape: f32[1,128], index: 6, kind: input, shape index: {}]
  %s7 = inlined_call_operand.hbm [shape: f32[2,64,128], index: 7, kind: output, shape index: {}]
  %s8 = sld [smem:[#allocation0]]
  $region77: #{tpu_custom_call.1} parent=0
    _
  %s10 = ssub.s32 1, %s8
  %s11 = scalar_select 0, %s10, %s8
  $region1: #{tpu_custom_call.1} parent=0
    #allocation4 [shape = 'u8[65536]{0}', space=vmem, size = 0x10000, scoped, tag = 'input window, operand 0']
    #allocation5 [shape = 's32[2]{0}', space=sflag, size = 0x8, scoped, tag = 'scoped memory for tpu_custom_call.1']
    #allocation6 [shape = 's32[2]{0}', space=sflag, size = 0x8, scoped, tag = 'scoped memory for tpu_custom_call.1']
    #allocation7 [shape = 'u8[16384]{0}', space=vmem, size = 0x4000, scoped, tag = 'input window, operand 1, single buffered']
    #allocation8 [shape = 's32[1]{0}', space=sflag, size = 0x4, scoped, tag = 'scoped memory for tpu_custom_call.1']
    #allocation9 [shape = 'u8[8192]{0}', space=vmem, size = 0x2000, scoped, tag = 'input window, operand 3, single buffered']
    #allocation10 [shape = 'u8[32768]{0}', space=vmem, size = 0x8000, scoped, tag = 'input window, operand 5, single buffered']
    #allocation11 [shape = 's32[1]{0}', space=sflag, size = 0x4, scoped, tag = 'scoped memory for tpu_custom_call.1']
    #allocation12 [shape = 'u8[65536]{0}', space=vmem, size = 0x10000, scoped, tag = 'output window, operand 0']
    %12 = vsyncpa [#allocation5], 0
    %s13 = scalar_lea.sflag [#allocation5], 1
    %14 = vsyncpa %s13, 0
    %15 = vsyncpa [#allocation8], 0
    %16 = vsyncpa [#allocation11], 0
    %17 = vsyncpa [#allocation6], 0
    %s18 = scalar_lea.sflag [#allocation6], 1
    %19 = vsyncpa %s18, 0
    loop: start=0, step=1, limit=4
    $region2: #{tpu_custom_call.1} parent=1 // loop_pre_header
      _
    $region3: #{tpu_custom_call.1} parent=1 // loop_header
      %s21 = sphi 0, %s25
      %p22 = scmp.ge.s32.totalorder %s21, 4
      %s31 = sphi 0, %s33
      %s34 = sphi 0, %s31
      %s35 = sphi 0, %s34
      %s51 = sphi 0, %s35
      %s55 = sphi 0, %s55
      %s57 = sphi 0, %s55
      %s58 = sphi 0, %s57
      %s72 = sphi 0, %s58
      %s76 = sphi 0, %s76
      %s78 = sphi 0, %s76
      %s79 = sphi 0, %s78
      %s93 = sphi 0, %s79
      %s97 = sphi 0, %s97
      %s99 = sphi 0, %s97
      %s100 = sphi 0, %s99
      %s114 = sphi 0, %s100
      %s118 = sphi 0, %s118
      %s120 = sphi 0, %s118
      %s121 = sphi 0, %s120
      %s135 = sphi 0, %s121
      %s139 = sphi 0, %s139
      %s141 = sphi 0, %s139
      %s142 = sphi 0, %s141
      %s156 = sphi 0, %s142
      %s160 = sphi 0, %s160
      %s162 = sphi 0, %s160
      %s163 = sphi 0, %s162
      %s177 = sphi 0, %s163
      %s183 = sphi 0, %s185
      %s186 = sphi 0, %s183
      %s187 = sphi 0, %s186
      %s203 = sphi 0, %s187
    $region4: #{tpu_custom_call.1} parent=1 // loop_header_branch
      %24 = sbr.rel (%p22) target = $region8
    $region5: #{tpu_custom_call.1} parent=1 // loop_body
      %s26 = ssub.s32 %s21, 1
      %s27 = ssub.s32 %s21, 2
      %s28 = sadd.s32 %s21, 1
      %s29 = ssub.s32 %s21, %s28
      %p30 = scmp.eq.s32.totalorder %s29, 0
      %s32 = sadd.s32 %s31, 1
      %s33 = scalar_select %p30, %s31, %s32
      %p36 = pneg %p30
      %p37 = scmp.eq.s32.totalorder %s21, 1
      %p38 = por %p36, %p37
      %p39 = scmp.ne.s32.totalorder %s31, %s34
      %p40 = scmp.eq.s32.totalorder %s21, 0
      %p41 = por %p39, %p40
      %p42 = scmp.ne.s32.totalorder %s31, %s34
      %p43 = scmp.eq.s32.totalorder %s26, 1
      %p44 = por %p42, %p43
      %p45 = scmp.ne.s32.totalorder %s34, %s35
      %p46 = scmp.eq.s32.totalorder %s26, 0
      %p47 = por %p45, %p46
      %p48 = scmp.ne.s32.totalorder %s34, %s35
      %p49 = scmp.eq.s32.totalorder %s27, 1
      %p50 = por %p48, %p49
      %p52 = scmp.ne.s32.totalorder %s35, %s51
      %p53 = scmp.eq.s32.totalorder %s27, 0
      %p54 = por %p52, %p53
      %s56 = sadd.s32 %s55, 1
      %p59 = scmp.eq.s32.totalorder %s21, 1
      %p60 = scmp.ne.s32.totalorder %s55, %s57
      %p61 = scmp.eq.s32.totalorder %s21, 0
      %p62 = por %p60, %p61
      %p63 = scmp.ne.s32.totalorder %s55, %s57
      %p64 = scmp.eq.s32.totalorder %s26, 1
      %p65 = por %p63, %p64
      %p66 = scmp.ne.s32.totalorder %s57, %s58
      %p67 = scmp.eq.s32.totalorder %s26, 0
      %p68 = por %p66, %p67
      %p69 = scmp.ne.s32.totalorder %s57, %s58
      %p70 = scmp.eq.s32.totalorder %s27, 1
      %p71 = por %p69, %p70
      %p73 = scmp.ne.s32.totalorder %s58, %s72
      %p74 = scmp.eq.s32.totalorder %s27, 0
      %p75 = por %p73, %p74
      %s77 = sadd.s32 %s76, 1
      %p80 = scmp.eq.s32.totalorder %s21, 1
      %p81 = scmp.ne.s32.totalorder %s76, %s78
      %p82 = scmp.eq.s32.totalorder %s21, 0
      %p83 = por %p81, %p82
      %p84 = scmp.ne.s32.totalorder %s76, %s78
      %p85 = scmp.eq.s32.totalorder %s26, 1
      %p86 = por %p84, %p85
      %p87 = scmp.ne.s32.totalorder %s78, %s79
      %p88 = scmp.eq.s32.totalorder %s26, 0
      %p89 = por %p87, %p88
      %p90 = scmp.ne.s32.totalorder %s78, %s79
      %p91 = scmp.eq.s32.totalorder %s27, 1
      %p92 = por %p90, %p91
      %p94 = scmp.ne.s32.totalorder %s79, %s93
      %p95 = scmp.eq.s32.totalorder %s27, 0
      %p96 = por %p94, %p95
      %s98 = sadd.s32 %s97, 1
      %p101 = scmp.eq.s32.totalorder %s21, 1
      %p102 = scmp.ne.s32.totalorder %s97, %s99
      %p103 = scmp.eq.s32.totalorder %s21, 0
      %p104 = por %p102, %p103
      %p105 = scmp.ne.s32.totalorder %s97, %s99
      %p106 = scmp.eq.s32.totalorder %s26, 1
      %p107 = por %p105, %p106
      %p108 = scmp.ne.s32.totalorder %s99, %s100
      %p109 = scmp.eq.s32.totalorder %s26, 0
      %p110 = por %p108, %p109
      %p111 = scmp.ne.s32.totalorder %s99, %s100
      %p112 = scmp.eq.s32.totalorder %s27, 1
      %p113 = por %p111, %p112
      %p115 = scmp.ne.s32.totalorder %s100, %s114
      %p116 = scmp.eq.s32.totalorder %s27, 0
      %p117 = por %p115, %p116
      %s119 = sadd.s32 %s118, 1
      %p122 = scmp.eq.s32.totalorder %s21, 1
      %p123 = scmp.ne.s32.totalorder %s118, %s120
      %p124 = scmp.eq.s32.totalorder %s21, 0
      %p125 = por %p123, %p124
      %p126 = scmp.ne.s32.totalorder %s118, %s120
      %p127 = scmp.eq.s32.totalorder %s26, 1
      %p128 = por %p126, %p127
      %p129 = scmp.ne.s32.totalorder %s120, %s121
      %p130 = scmp.eq.s32.totalorder %s26, 0
      %p131 = por %p129, %p130
      %p132 = scmp.ne.s32.totalorder %s120, %s121
      %p133 = scmp.eq.s32.totalorder %s27, 1
      %p134 = por %p132, %p133
      %p136 = scmp.ne.s32.totalorder %s121, %s135
      %p137 = scmp.eq.s32.totalorder %s27, 0
      %p138 = por %p136, %p137
      %s140 = sadd.s32 %s139, 1
      %p143 = scmp.eq.s32.totalorder %s21, 1
      %p144 = scmp.ne.s32.totalorder %s139, %s141
      %p145 = scmp.eq.s32.totalorder %s21, 0
      %p146 = por %p144, %p145
      %p147 = scmp.ne.s32.totalorder %s139, %s141
      %p148 = scmp.eq.s32.totalorder %s26, 1
      %p149 = por %p147, %p148
      %p150 = scmp.ne.s32.totalorder %s141, %s142
      %p151 = scmp.eq.s32.totalorder %s26, 0
      %p152 = por %p150, %p151
      %p153 = scmp.ne.s32.totalorder %s141, %s142
      %p154 = scmp.eq.s32.totalorder %s27, 1
      %p155 = por %p153, %p154
      %p157 = scmp.ne.s32.totalorder %s142, %s156
      %p158 = scmp.eq.s32.totalorder %s27, 0
      %p159 = por %p157, %p158
      %s161 = sadd.s32 %s160, 1
      %p164 = scmp.eq.s32.totalorder %s21, 1
      %p165 = scmp.ne.s32.totalorder %s160, %s162
      %p166 = scmp.eq.s32.totalorder %s21, 0
      %p167 = por %p165, %p166
      %p168 = scmp.ne.s32.totalorder %s160, %s162
      %p169 = scmp.eq.s32.totalorder %s26, 1
      %p170 = por %p168, %p169
      %p171 = scmp.ne.s32.totalorder %s162, %s163
      %p172 = scmp.eq.s32.totalorder %s26, 0
      %p173 = por %p171, %p172
      %p174 = scmp.ne.s32.totalorder %s162, %s163
      %p175 = scmp.eq.s32.totalorder %s27, 1
      %p176 = por %p174, %p175
      %p178 = scmp.ne.s32.totalorder %s163, %s177
      %p179 = scmp.eq.s32.totalorder %s27, 0
      %p180 = por %p178, %p179
      %s181 = ssub.s32 %s21, %s28
      %p182 = scmp.eq.s32.totalorder %s181, 0
      %s184 = sadd.s32 %s183, 1
      %s185 = scalar_select %p182, %s183, %s184
      %p188 = pneg %p182
      %p189 = scmp.eq.s32.totalorder %s21, 1
      %p190 = por %p188, %p189
      %p191 = scmp.ne.s32.totalorder %s183, %s186
      %p192 = scmp.eq.s32.totalorder %s21, 0
      %p193 = por %p191, %p192
      %p194 = scmp.ne.s32.totalorder %s183, %s186
      %p195 = scmp.eq.s32.totalorder %s26, 1
      %p196 = por %p194, %p195
      %p197 = scmp.ne.s32.totalorder %s186, %s187
      %p198 = scmp.eq.s32.totalorder %s26, 0
      %p199 = por %p197, %p198
      %p200 = scmp.ne.s32.totalorder %s186, %s187
      %p201 = scmp.eq.s32.totalorder %s27, 1
      %p202 = por %p200, %p201
      %p204 = scmp.ne.s32.totalorder %s187, %s203
      %p205 = scmp.eq.s32.totalorder %s27, 0
      %p206 = por %p204, %p205
      %p207 = scmp.le.s32.totalorder 1, %s21
      %p208 = scmp.lt.s32.totalorder %s21, 3
      %p209 = pnand %p207, %p208
      %p210 = pneg %p209
      // Predicated region
      $region9: #{tpu_custom_call.1} parent=5 // pred_check
        _
      $region10: #{tpu_custom_call.1} parent=5 // pred_check_branch
        %212 = sbr.rel (%p209) target = $region12
      $region11: #{tpu_custom_call.1} parent=5 // pred_region
        %s213 = ssub.s32 %s21, 1
        // Predicated region
        $region13: #{tpu_custom_call.1} parent=11 // pred_check
          %p214 = pneg %p68
        $region14: #{tpu_custom_call.1} parent=11 // pred_check_branch
          %216 = sbr.rel (%p214) target = $region16
        $region15: #{tpu_custom_call.1} parent=11 // pred_region
          %218 = vsyncadd [#allocation8], 0
          %s219 = sshll.u32 %s1, 4
          %s220 = int_to_ptr.hbm [resolvable:$true] %s219
          %s221 = sshll.u32 [#allocation7], 4
          %s222 = int_to_ptr.vmem [resolvable:$true] %s221
          %227 = dma.hbm_to_vmem [thread:$0]  %s220, 512, %s222, [#allocation8], 64, 64, 4
        $region16: #{tpu_custom_call.1} parent=11 // pred_fallthru
          _
        // Predicated region
        $region17: #{tpu_custom_call.1} parent=11 // pred_check
          %p228 = pneg %p89
        $region18: #{tpu_custom_call.1} parent=11 // pred_check_branch
          %230 = sbr.rel (%p228) target = $region20
        $region19: #{tpu_custom_call.1} parent=11 // pred_region
          _
        $region20: #{tpu_custom_call.1} parent=11 // pred_fallthru
          _
        // Predicated region
        $region21: #{tpu_custom_call.1} parent=11 // pred_check
          %p231 = pneg %p110
        $region22: #{tpu_custom_call.1} parent=11 // pred_check_branch
          %233 = sbr.rel (%p231) target = $region24
        $region23: #{tpu_custom_call.1} parent=11 // pred_region
          %235 = vsyncadd [#allocation8], 0
          %s236 = sshll.u32 %s3, 4
          %s237 = int_to_ptr.hbm [resolvable:$true] %s236
          %s238 = sshll.u32 [#allocation9], 4
          %s239 = int_to_ptr.vmem [resolvable:$true] %s238
          %244 = dma.hbm_to_vmem [thread:$0]  %s237, 256, %s239, [#allocation8], 128, 128, 8
        $region24: #{tpu_custom_call.1} parent=11 // pred_fallthru
          _
        // Predicated region
        $region25: #{tpu_custom_call.1} parent=11 // pred_check
          %p245 = pneg %p131
        $region26: #{tpu_custom_call.1} parent=11 // pred_check_branch
          %247 = sbr.rel (%p245) target = $region28
        $region27: #{tpu_custom_call.1} parent=11 // pred_region
          _
        $region28: #{tpu_custom_call.1} parent=11 // pred_fallthru
          _
        // Predicated region
        $region29: #{tpu_custom_call.1} parent=11 // pred_check
          %p248 = pneg %p152
        $region30: #{tpu_custom_call.1} parent=11 // pred_check_branch
          %250 = sbr.rel (%p248) target = $region32
        $region31: #{tpu_custom_call.1} parent=11 // pred_region
          %252 = vsyncadd [#allocation11], 0
          %s253 = sshll.u32 %s5, 4
          %s254 = int_to_ptr.hbm [resolvable:$true] %s253
          %s255 = sshll.u32 [#allocation10], 4
          %s256 = int_to_ptr.vmem [resolvable:$true] %s255
          %261 = dma.hbm_to_vmem [thread:$0]  %s254, 1024, %s256, [#allocation11], 64, 64, 4
        $region32: #{tpu_custom_call.1} parent=11 // pred_fallthru
          _
        // Predicated region
        $region33: #{tpu_custom_call.1} parent=11 // pred_check
          %p262 = pneg %p173
        $region34: #{tpu_custom_call.1} parent=11 // pred_check_branch
          %264 = sbr.rel (%p262) target = $region36
        $region35: #{tpu_custom_call.1} parent=11 // pred_region
          _
        $region36: #{tpu_custom_call.1} parent=11 // pred_fallthru
          _
      $region12: #{tpu_custom_call.1} parent=5 // pred_fallthru
        _
      %p265 = scmp.lt.s32.totalorder %s21, 2
      // Predicated region
      $region37: #{tpu_custom_call.1} parent=5 // pred_check
        %p266 = pneg %p265
      $region38: #{tpu_custom_call.1} parent=5 // pred_check_branch
        %268 = sbr.rel (%p266) target = $region40
      $region39: #{tpu_custom_call.1} parent=5 // pred_region
        // Predicated region
        $region41: #{tpu_custom_call.1} parent=39 // pred_check
          %p269 = pneg %p41
        $region42: #{tpu_custom_call.1} parent=39 // pred_check_branch
          %271 = sbr.rel (%p269) target = $region44
        $region43: #{tpu_custom_call.1} parent=39 // pred_region
          %s272 = sand.u32 %s31, 1
          %s273 = scalar_lea.sflag [#allocation5], %s272
          %s274 = sand.u32 %s31, 1
          %s275 = smul.addr %s274, 64
          %s276 = scalar_lea.vmem [#allocation4], %s275
          %278 = vsyncadd %s273, 0
          %s279 = smul.addr %s21, 8
          %s280 = smul.addr %s279, 8
          %s281 = scalar_lea.hbm %s0, %s280
          %s282 = sshll.u32 %s281, 4
          %s283 = int_to_ptr.hbm [resolvable:$true] %s282
          %s284 = sshll.u32 %s276, 4
          %s285 = int_to_ptr.vmem [resolvable:$true] %s284
          %290 = dma.hbm_to_vmem [thread:$0]  %s283, 1024, %s285, %s273, 128, 128, 8
        $region44: #{tpu_custom_call.1} parent=39 // pred_fallthru
          _
      $region40: #{tpu_custom_call.1} parent=5 // pred_fallthru
        _
      %p291 = scmp.le.s32.totalorder 1, %s21
      %p292 = scmp.lt.s32.totalorder %s21, 3
      %p293 = pnand %p291, %p292
      %p294 = pneg %p293
      // Predicated region
      $region45: #{tpu_custom_call.1} parent=5 // pred_check
        _
      $region46: #{tpu_custom_call.1} parent=5 // pred_check_branch
        %296 = sbr.rel (%p293) target = $region48
      $region47: #{tpu_custom_call.1} parent=5 // pred_region
        %s297 = ssub.s32 %s21, 1
        %s298 = sand.u32 %s34, 1
        %s299 = scalar_lea.sflag [#allocation5], %s298
        %s300 = sand.u32 %s34, 1
        %s301 = smul.addr %s300, 64
        %s302 = scalar_lea.vmem [#allocation4], %s301
        // Predicated region
        $region49: #{tpu_custom_call.1} parent=47 // pred_check
          %p303 = pneg %p47
        $region50: #{tpu_custom_call.1} parent=47 // pred_check_branch
          %305 = sbr.rel (%p303) target = $region52
        $region51: #{tpu_custom_call.1} parent=47 // pred_region
          %307 = dma.done %s299, 1024
        $region52: #{tpu_custom_call.1} parent=47 // pred_fallthru
          _
        // Predicated region
        $region53: #{tpu_custom_call.1} parent=47 // pred_check
          %p308 = pneg %p68
        $region54: #{tpu_custom_call.1} parent=47 // pred_check_branch
          %310 = sbr.rel (%p308) target = $region56
        $region55: #{tpu_custom_call.1} parent=47 // pred_region
          %312 = dma.done [#allocation8], 512
        $region56: #{tpu_custom_call.1} parent=47 // pred_fallthru
          _
        // Predicated region
        $region57: #{tpu_custom_call.1} parent=47 // pred_check
          %p313 = pneg %p110
        $region58: #{tpu_custom_call.1} parent=47 // pred_check_branch
          %315 = sbr.rel (%p313) target = $region60
        $region59: #{tpu_custom_call.1} parent=47 // pred_region
          %317 = dma.done [#allocation8], 256
        $region60: #{tpu_custom_call.1} parent=47 // pred_fallthru
          _
        // Predicated region
        $region61: #{tpu_custom_call.1} parent=47 // pred_check
          %p318 = pneg %p152
        $region62: #{tpu_custom_call.1} parent=47 // pred_check_branch
          %320 = sbr.rel (%p318) target = $region64
        $region63: #{tpu_custom_call.1} parent=47 // pred_region
          %322 = dma.done [#allocation11], 1024
        $region64: #{tpu_custom_call.1} parent=47 // pred_fallthru
          _
        %s323 = sand.u32 %s34, 1
        %s324 = scalar_lea.sflag [#allocation5], %s323
        %s325 = sand.u32 %s34, 1
        %s326 = smul.addr %s325, 64
        %s327 = scalar_lea.vmem [#allocation4], %s326
        %p328 = pneg %p47
        %p329 = pneg %p44
        %p330 = pneg %p68
        %p331 = pneg %p65
        %p332 = pneg %p89
        %p333 = pneg %p86
        %p334 = pneg %p110
        %p335 = pneg %p107
        %p336 = pneg %p131
        %p337 = pneg %p128
        %p338 = pneg %p152
        %p339 = pneg %p149
        %p340 = pneg %p173
        %p341 = pneg %p170
        %p342 = pneg %p199
        %p343 = pneg %p196
        %s344 = sand.u32 %s186, 1
        %s345 = scalar_lea.sflag [#allocation6], %s344
        %s346 = sand.u32 %s186, 1
        %s347 = smul.addr %s346, 64
        %s348 = scalar_lea.vmem [#allocation12], %s347
        %v350 = vlaneseq
        %v351 = vshrl.u32 %v350, 7
        %v352 = vadd.s32 %v351, 8
        %v353 = vadd.s32 %v351, 16
        %v354 = vadd.s32 %v351, 24
        %v355 = vadd.s32 %v351, 32
        %v356 = vadd.s32 %v351, 40
        %v357 = vadd.s32 %v351, 48
        %v358 = vadd.s32 %v351, 56
        %vm359 = vcmp.lt.s32.totalorder %v351, 0
        %v360 = vsub.s32 0, %v351
        %v361 = vsel %vm359, %v360, %v351
        %v362 = vshrl.u32 %v361, 3
        %v363 = vand.u32 %v361, 7
        %v364 = vsub.s32 0, %v363
        %v365 = vsel %vm359, %v364, %v363
        %vm366 = vcmp.lt.s32.totalorder %v352, 0
        %v367 = vsub.s32 0, %v352
        %v368 = vsel %vm366, %v367, %v352
        %v369 = vshrl.u32 %v368, 3
        %v370 = vand.u32 %v368, 7
        %v371 = vsub.s32 0, %v370
        %v372 = vsel %vm366, %v371, %v370
        %vm373 = vcmp.lt.s32.totalorder %v353, 0
        %v374 = vsub.s32 0, %v353
        %v375 = vsel %vm373, %v374, %v353
        %v376 = vshrl.u32 %v375, 3
        %v377 = vand.u32 %v375, 7
        %v378 = vsub.s32 0, %v377
        %v379 = vsel %vm373, %v378, %v377
        %vm380 = vcmp.lt.s32.totalorder %v354, 0
        %v381 = vsub.s32 0, %v354
        %v382 = vsel %vm380, %v381, %v354
        %v383 = vshrl.u32 %v382, 3
        %v384 = vand.u32 %v382, 7
        %v385 = vsub.s32 0, %v384
        %v386 = vsel %vm380, %v385, %v384
        %vm387 = vcmp.lt.s32.totalorder %v355, 0
        %v388 = vsub.s32 0, %v355
        %v389 = vsel %vm387, %v388, %v355
        %v390 = vshrl.u32 %v389, 3
        %v391 = vand.u32 %v389, 7
        %v392 = vsub.s32 0, %v391
        %v393 = vsel %vm387, %v392, %v391
        %vm394 = vcmp.lt.s32.totalorder %v356, 0
        %v395 = vsub.s32 0, %v356
        %v396 = vsel %vm394, %v395, %v356
        %v397 = vshrl.u32 %v396, 3
        %v398 = vand.u32 %v396, 7
        %v399 = vsub.s32 0, %v398
        %v400 = vsel %vm394, %v399, %v398
        %vm401 = vcmp.lt.s32.totalorder %v357, 0
        %v402 = vsub.s32 0, %v357
        %v403 = vsel %vm401, %v402, %v357
        %v404 = vshrl.u32 %v403, 3
        %v405 = vand.u32 %v403, 7
        %v406 = vsub.s32 0, %v405
        %v407 = vsel %vm401, %v406, %v405
        %vm408 = vcmp.lt.s32.totalorder %v358, 0
        %v409 = vsub.s32 0, %v358
        %v410 = vsel %vm408, %v409, %v358
        %v411 = vshrl.u32 %v410, 3
        %v412 = vand.u32 %v410, 7
        %v413 = vsub.s32 0, %v412
        %v414 = vsel %vm408, %v413, %v412
        %vm415 = vcmp.ne.s32.totalorder %v365, 0
        %vm416 = vcmp.ne.s32.totalorder %v372, 0
        %vm417 = vcmp.ne.s32.totalorder %v379, 0
        %vm418 = vcmp.ne.s32.totalorder %v386, 0
        %vm419 = vcmp.ne.s32.totalorder %v393, 0
        %vm420 = vcmp.ne.s32.totalorder %v400, 0
        %vm421 = vcmp.ne.s32.totalorder %v407, 0
        %vm422 = vcmp.ne.s32.totalorder %v414, 0
        %vm423 = vcmp.lt.s32.totalorder %v365, 0
        %vm424 = vcmp.lt.s32.totalorder %v372, 0
        %vm425 = vcmp.lt.s32.totalorder %v379, 0
        %vm426 = vcmp.lt.s32.totalorder %v386, 0
        %vm427 = vcmp.lt.s32.totalorder %v393, 0
        %vm428 = vcmp.lt.s32.totalorder %v400, 0
        %vm429 = vcmp.lt.s32.totalorder %v407, 0
        %vm430 = vcmp.lt.s32.totalorder %v414, 0
        %vm431 = vmand %vm423, %vm415
        %vm432 = vmand %vm424, %vm416
        %vm433 = vmand %vm425, %vm417
        %vm434 = vmand %vm426, %vm418
        %vm435 = vmand %vm427, %vm419
        %vm436 = vmand %vm428, %vm420
        %vm437 = vmand %vm429, %vm421
        %vm438 = vmand %vm430, %vm422
        %v439 = vadd.s32 %v365, 8
        %v440 = vadd.s32 %v372, 8
        %v441 = vadd.s32 %v379, 8
        %v442 = vadd.s32 %v386, 8
        %v443 = vadd.s32 %v393, 8
        %v444 = vadd.s32 %v400, 8
        %v445 = vadd.s32 %v407, 8
        %v446 = vadd.s32 %v414, 8
        %v447 = vsel %vm431, %v439, %v365
        %v448 = vsel %vm432, %v440, %v372
        %v449 = vsel %vm433, %v441, %v379
        %v450 = vsel %vm434, %v442, %v386
        %v451 = vsel %vm435, %v443, %v393
        %v452 = vsel %vm436, %v444, %v400
        %v453 = vsel %vm437, %v445, %v407
        %v454 = vsel %vm438, %v446, %v414
        %vm455 = vcmp.ge.s32.totalorder %v447, 1
        %vm456 = vcmp.ge.s32.totalorder %v448, 1
        %vm457 = vcmp.ge.s32.totalorder %v449, 1
        %vm458 = vcmp.ge.s32.totalorder %v450, 1
        %vm459 = vcmp.ge.s32.totalorder %v451, 1
        %vm460 = vcmp.ge.s32.totalorder %v452, 1
        %vm461 = vcmp.ge.s32.totalorder %v453, 1
        %vm462 = vcmp.ge.s32.totalorder %v454, 1
        %vm463 = vcmp.le.s32.totalorder %v447, 6
        %vm464 = vcmp.le.s32.totalorder %v448, 6
        %vm465 = vcmp.le.s32.totalorder %v449, 6
        %vm466 = vcmp.le.s32.totalorder %v450, 6
        %vm467 = vcmp.le.s32.totalorder %v451, 6
        %vm468 = vcmp.le.s32.totalorder %v452, 6
        %vm469 = vcmp.le.s32.totalorder %v453, 6
        %vm470 = vcmp.le.s32.totalorder %v454, 6
        %v471 = vld [vmem:[#allocation9] sm:$0xff]
        %v472 = vld [vmem:[#allocation9 + $0x8] sm:$0xff]
        %v473 = vld [vmem:[%s4] sm:$0x1]
        %v474 = vld [vmem:[%s2] sm:$0x1]
        %v475 = vld [vmem:[%s6] sm:$0x1]
        %v476 = vld [vmem:[#allocation7] sm:$0xf]
        %v477 = vld [vmem:[#allocation7 + $0x4] sm:$0xf]
        %v478 = vld [vmem:[#allocation7 + $0x8] sm:$0xf]
        %v479 = vld [vmem:[#allocation7 + $0xc] sm:$0xf]
        %v480 = vld [vmem:[#allocation7 + $0x10] sm:$0xf]
        %v481 = vld [vmem:[#allocation7 + $0x14] sm:$0xf]
        %v482 = vld [vmem:[#allocation7 + $0x18] sm:$0xf]
        %v483 = vld [vmem:[#allocation7 + $0x1c] sm:$0xf]
        %v484 = vld [vmem:[#allocation10] sm:$0xf]
        %v485 = vld [vmem:[#allocation10 + $0x4] sm:$0xf]
        %v486 = vld [vmem:[#allocation10 + $0x8] sm:$0xf]
        %v487 = vld [vmem:[#allocation10 + $0xc] sm:$0xf]
        %v488 = vld [vmem:[#allocation10 + $0x10] sm:$0xf]
        %v489 = vld [vmem:[#allocation10 + $0x14] sm:$0xf]
        %v490 = vld [vmem:[#allocation10 + $0x18] sm:$0xf]
        %v491 = vld [vmem:[#allocation10 + $0x1c] sm:$0xf]
        %v492 = vld [vmem:[#allocation10 + $0x20] sm:$0xf]
        %v493 = vld [vmem:[#allocation10 + $0x24] sm:$0xf]
        %v494 = vld [vmem:[#allocation10 + $0x28] sm:$0xf]
        %v495 = vld [vmem:[#allocation10 + $0x2c] sm:$0xf]
        %v496 = vld [vmem:[#allocation10 + $0x30] sm:$0xf]
        %v497 = vld [vmem:[#allocation10 + $0x34] sm:$0xf]
        %v498 = vld [vmem:[#allocation10 + $0x38] sm:$0xf]
        %v499 = vld [vmem:[#allocation10 + $0x3c] sm:$0xf]
        %500 = vst [vmem:[#allocation2] sm:$0xff] 0.0
        %501 = vst [vmem:[#allocation2 + $0x48] sm:$0xff] 0.0
        %v502 = vld [vmem:[%s302] sm:$0xff]
        %v503 = vld [vmem:[%s302 + $0x8] sm:$0xff]
        %v504 = vld [vmem:[%s302 + $0x10] sm:$0xff]
        %v505 = vld [vmem:[%s302 + $0x18] sm:$0xff]
        %v506 = vld [vmem:[%s302 + $0x20] sm:$0xff]
        %v507 = vld [vmem:[%s302 + $0x28] sm:$0xff]
        %v508 = vld [vmem:[%s302 + $0x30] sm:$0xff]
        %v509 = vld [vmem:[%s302 + $0x38] sm:$0xff]
        %v510 = vpack.c.bf16 %v503, %v502
        %v511 = vpack.c.bf16 %v505, %v504
        %v512 = vpack.c.bf16 %v507, %v506
        %v513 = vpack.c.bf16 %v509, %v508
        %v515 = vperm.slane %v474, 0
        %v525 = vunpack.c.l.b16 %v476
        %v526 = vunpack.c.l.b16 %v477
        %v527 = vunpack.c.l.b16 %v478
        %v528 = vunpack.c.l.b16 %v479
        %v529 = vunpack.c.l.b16 %v480
        %v530 = vunpack.c.l.b16 %v481
        %v531 = vunpack.c.l.b16 %v482
        %v532 = vunpack.c.l.b16 %v483
        %v533 = vpack.c.b16 %v526, %v525
        %v534 = vpack.c.b16 %v528, %v527
        %v535 = vpack.c.b16 %v530, %v529
        %v536 = vpack.c.b16 %v532, %v531
        %vm541 = vcmask 523264
        %v543 = vsel %vm541, %v510, 0
        %v546 = vsel %vm541, %v511, 0
        %v549 = vsel %vm541, %v512, 0
        %v552 = vsel %vm541, %v513, 0
        %554 = vmatpush.bf16.msra.mxu0 0
        %555 = vmatpush.bf16.msra.mxu0 0
        %556 = vmatpush.bf16.msra.mxu0 0
        %557 = vmatpush.bf16.msra.mxu0 0
        %558 = vmatpush.bf16.msra.mxu0 %v536
        %559 = vmatpush.bf16.msra.mxu0 %v535
        %560 = vmatpush.bf16.msra.mxu0 %v534
        %561 = vmatpush.bf16.msra.mxu0 %v533
        %562 = vmatmul.bf16.gmra.mxu0 %v543
        %v563 = vpop.f32.mrf.mxu0
        %v564 = vadd.f32 %v515, %v563
        %v565 = vpop.f32.mrf.mxu0
        %v566 = vadd.f32 %v515, %v565
        %567 = vmatmul.bf16.gmra.mxu0 %v546
        %v568 = vpop.f32.mrf.mxu0
        %v569 = vadd.f32 %v515, %v568
        %v570 = vpop.f32.mrf.mxu0
        %v571 = vadd.f32 %v515, %v570
        %572 = vmatmul.bf16.gmra.mxu0 %v549
        %v573 = vpop.f32.mrf.mxu0
        %v574 = vadd.f32 %v515, %v573
        %v575 = vpop.f32.mrf.mxu0
        %v576 = vadd.f32 %v515, %v575
        %577 = vmatmul.bf16.gmra.mxu0 %v552
        %v578 = vpop.f32.mrf.mxu0
        %v579 = vadd.f32 %v515, %v578
        %v580 = vpop.f32.mrf.mxu0
        %v581 = vadd.f32 %v515, %v580
        %582 = vdwg.mxu0
        %583 = vst [vmem:[#allocation2 + $0x8] sm:$0xff] %v564
        %584 = vst [vmem:[#allocation2 + $0x10] sm:$0xff] %v566
        %585 = vst [vmem:[#allocation2 + $0x18] sm:$0xff] %v569
        %586 = vst [vmem:[#allocation2 + $0x20] sm:$0xff] %v571
        %587 = vst [vmem:[#allocation2 + $0x28] sm:$0xff] %v574
        %588 = vst [vmem:[#allocation2 + $0x30] sm:$0xff] %v576
        %589 = vst [vmem:[#allocation2 + $0x38] sm:$0xff] %v579
        %590 = vst [vmem:[#allocation2 + $0x40] sm:$0xff] %v581
        %v591 = vld [vmem:[#allocation2] sm:$0xff]
        %v592 = vld [vmem:[#allocation2 + $0x8] sm:$0xff]
        %v593 = vld [vmem:[#allocation2 + $0x10] sm:$0xff]
        %v594 = vld [vmem:[#allocation2 + $0x18] sm:$0xff]
        %v595 = vld [vmem:[#allocation2 + $0x20] sm:$0xff]
        %v596 = vld [vmem:[#allocation2 + $0x28] sm:$0xff]
        %v597 = vld [vmem:[#allocation2 + $0x30] sm:$0xff]
        %v598 = vld [vmem:[#allocation2 + $0x38] sm:$0xff]
        %v599 = vld [vmem:[#allocation2 + $0x10] sm:$0xff]
        %v600 = vld [vmem:[#allocation2 + $0x18] sm:$0xff]
        %v601 = vld [vmem:[#allocation2 + $0x20] sm:$0xff]
        %v602 = vld [vmem:[#allocation2 + $0x28] sm:$0xff]
        %v603 = vld [vmem:[#allocation2 + $0x30] sm:$0xff]
        %v604 = vld [vmem:[#allocation2 + $0x38] sm:$0xff]
        %v605 = vld [vmem:[#allocation2 + $0x40] sm:$0xff]
        %v606 = vld [vmem:[#allocation2 + $0x48] sm:$0xff]
        %v607 = vperm.slane %v471, 1
        %v608 = vmul.f32 %v591, %v607
        %v609 = vmul.f32 %v592, %v607
        %v610 = vmul.f32 %v593, %v607
        %v611 = vmul.f32 %v594, %v607
        %v612 = vmul.f32 %v595, %v607
        %v613 = vmul.f32 %v596, %v607
        %v614 = vmul.f32 %v597, %v607
        %v615 = vmul.f32 %v598, %v607
        %v616 = vperm.slane %v471, 4
        %v617 = vmul.f32 %v564, %v616
        %v618 = vmul.f32 %v566, %v616
        %v619 = vmul.f32 %v569, %v616
        %v620 = vmul.f32 %v571, %v616
        %v621 = vmul.f32 %v574, %v616
        %v622 = vmul.f32 %v576, %v616
        %v623 = vmul.f32 %v579, %v616
        %v624 = vmul.f32 %v581, %v616
        %v625 = vadd.f32 %v608, %v617
        %v626 = vadd.f32 %v609, %v618
        %v627 = vadd.f32 %v610, %v619
        %v628 = vadd.f32 %v611, %v620
        %v629 = vadd.f32 %v612, %v621
        %v630 = vadd.f32 %v613, %v622
        %v631 = vadd.f32 %v614, %v623
        %v632 = vadd.f32 %v615, %v624
        %v633 = vperm.slane %v471, 7
        %v634 = vmul.f32 %v599, %v633
        %v635 = vmul.f32 %v600, %v633
        %v636 = vmul.f32 %v601, %v633
        %v637 = vmul.f32 %v602, %v633
        %v638 = vmul.f32 %v603, %v633
        %v639 = vmul.f32 %v604, %v633
        %v640 = vmul.f32 %v605, %v633
        %v641 = vmul.f32 %v606, %v633
        %v642 = vadd.f32 %v625, %v634
        %v643 = vadd.f32 %v626, %v635
        %v644 = vadd.f32 %v627, %v636
        %v645 = vadd.f32 %v628, %v637
        %v646 = vadd.f32 %v629, %v638
        %v647 = vadd.f32 %v630, %v639
        %v648 = vadd.f32 %v631, %v640
        %v649 = vadd.f32 %v632, %v641
        %v650 = vperm.slane %v471, 0
        %v651 = vmul.f32 %v591, %v650
        %v652 = vmul.f32 %v592, %v650
        %v653 = vmul.f32 %v593, %v650
        %v654 = vmul.f32 %v594, %v650
        %v655 = vmul.f32 %v595, %v650
        %v656 = vmul.f32 %v596, %v650
        %v657 = vmul.f32 %v597, %v650
        %v658 = vmul.f32 %v598, %v650
        %v659 = vperm.slane %v471, 3
        %v660 = vmul.f32 %v564, %v659
        %v661 = vmul.f32 %v566, %v659
        %v662 = vmul.f32 %v569, %v659
        %v663 = vmul.f32 %v571, %v659
        %v664 = vmul.f32 %v574, %v659
        %v665 = vmul.f32 %v576, %v659
        %v666 = vmul.f32 %v579, %v659
        %v667 = vmul.f32 %v581, %v659
        %v668 = vadd.f32 %v651, %v660
        %v669 = vadd.f32 %v652, %v661
        %v670 = vadd.f32 %v653, %v662
        %v671 = vadd.f32 %v654, %v663
        %v672 = vadd.f32 %v655, %v664
        %v673 = vadd.f32 %v656, %v665
        %v674 = vadd.f32 %v657, %v666
        %v675 = vadd.f32 %v658, %v667
        %v676 = vperm.slane %v471, 6
        %v677 = vmul.f32 %v599, %v676
        %v678 = vmul.f32 %v600, %v676
        %v679 = vmul.f32 %v601, %v676
        %v680 = vmul.f32 %v602, %v676
        %v681 = vmul.f32 %v603, %v676
        %v682 = vmul.f32 %v604, %v676
        %v683 = vmul.f32 %v605, %v676
        %v684 = vmul.f32 %v606, %v676
        %v685 = vadd.f32 %v668, %v677
        %v686 = vadd.f32 %v669, %v678
        %v687 = vadd.f32 %v670, %v679
        %v688 = vadd.f32 %v671, %v680
        %v689 = vadd.f32 %v672, %v681
        %v690 = vadd.f32 %v673, %v682
        %v691 = vadd.f32 %v674, %v683
        %v692 = vadd.f32 %v675, %v684
        %v693 = vrot.slane %v685, 7
        %v694 = vrot.slane %v686, 7
        %v695 = vrot.slane %v687, 7
        %v696 = vrot.slane %v688, 7
        %v697 = vrot.slane %v689, 7
        %v698 = vrot.slane %v690, 7
        %v699 = vrot.slane %v691, 7
        %v700 = vrot.slane %v692, 7
        %vm701 = vcmp.lt.s32.totalorder %v351, 1
        %v702 = vsel %vm701, %v699, %v700
        %v703 = vsel %vm701, %v698, %v699
        %v704 = vsel %vm701, %v697, %v698
        %v705 = vsel %vm701, %v696, %v697
        %v706 = vsel %vm701, %v695, %v696
        %v707 = vsel %vm701, %v694, %v695
        %v708 = vsel %vm701, %v693, %v694
        %v709 = vsel %vm701, %v700, %v693
        %v710 = vsel %vm455, 1, 0
        %v711 = vsel %vm456, 1, 0
        %v712 = vsel %vm457, 1, 0
        %v713 = vsel %vm458, 1, 0
        %v714 = vsel %vm459, 1, 0
        %v715 = vsel %vm460, 1, 0
        %v716 = vsel %vm461, 1, 0
        %v717 = vsel %vm462, 1, 0
        %vm718 = vcmp.eq.s32.totalorder %v710, 1
        %vm719 = vcmp.eq.s32.totalorder %v711, 1
        %vm720 = vcmp.eq.s32.totalorder %v712, 1
        %vm721 = vcmp.eq.s32.totalorder %v713, 1
        %vm722 = vcmp.eq.s32.totalorder %v714, 1
        %vm723 = vcmp.eq.s32.totalorder %v715, 1
        %vm724 = vcmp.eq.s32.totalorder %v716, 1
        %vm725 = vcmp.eq.s32.totalorder %v717, 1
        %v726 = vsel %vm718, %v709, 0.0
        %v727 = vsel %vm719, %v708, 0.0
        %v728 = vsel %vm720, %v707, 0.0
        %v729 = vsel %vm721, %v706, 0.0
        %v730 = vsel %vm722, %v705, 0.0
        %v731 = vsel %vm723, %v704, 0.0
        %v732 = vsel %vm724, %v703, 0.0
        %v733 = vsel %vm725, %v702, 0.0
        %v734 = vadd.f32 %v642, %v726
        %v735 = vadd.f32 %v643, %v727
        %v736 = vadd.f32 %v644, %v728
        %v737 = vadd.f32 %v645, %v729
        %v738 = vadd.f32 %v646, %v730
        %v739 = vadd.f32 %v647, %v731
        %v740 = vadd.f32 %v648, %v732
        %v741 = vadd.f32 %v649, %v733
        %v742 = vperm.slane %v471, 2
        %v743 = vmul.f32 %v591, %v742
        %v744 = vmul.f32 %v592, %v742
        %v745 = vmul.f32 %v593, %v742
        %v746 = vmul.f32 %v594, %v742
        %v747 = vmul.f32 %v595, %v742
        %v748 = vmul.f32 %v596, %v742
        %v749 = vmul.f32 %v597, %v742
        %v750 = vmul.f32 %v598, %v742
        %v751 = vperm.slane %v471, 5
        %v752 = vmul.f32 %v564, %v751
        %v753 = vmul.f32 %v566, %v751
        %v754 = vmul.f32 %v569, %v751
        %v755 = vmul.f32 %v571, %v751
        %v756 = vmul.f32 %v574, %v751
        %v757 = vmul.f32 %v576, %v751
        %v758 = vmul.f32 %v579, %v751
        %v759 = vmul.f32 %v581, %v751
        %v760 = vadd.f32 %v743, %v752
        %v761 = vadd.f32 %v744, %v753
        %v762 = vadd.f32 %v745, %v754
        %v763 = vadd.f32 %v746, %v755
        %v764 = vadd.f32 %v747, %v756
        %v765 = vadd.f32 %v748, %v757
        %v766 = vadd.f32 %v749, %v758
        %v767 = vadd.f32 %v750, %v759
        %v768 = vperm.slane %v472, 0
        %v769 = vmul.f32 %v599, %v768
        %v770 = vmul.f32 %v600, %v768
        %v771 = vmul.f32 %v601, %v768
        %v772 = vmul.f32 %v602, %v768
        %v773 = vmul.f32 %v603, %v768
        %v774 = vmul.f32 %v604, %v768
        %v775 = vmul.f32 %v605, %v768
        %v776 = vmul.f32 %v606, %v768
        %v777 = vadd.f32 %v760, %v769
        %v778 = vadd.f32 %v761, %v770
        %v779 = vadd.f32 %v762, %v771
        %v780 = vadd.f32 %v763, %v772
        %v781 = vadd.f32 %v764, %v773
        %v782 = vadd.f32 %v765, %v774
        %v783 = vadd.f32 %v766, %v775
        %v784 = vadd.f32 %v767, %v776
        %v785 = vrot.slane %v777, 1
        %v786 = vrot.slane %v778, 1
        %v787 = vrot.slane %v779, 1
        %v788 = vrot.slane %v780, 1
        %v789 = vrot.slane %v781, 1
        %v790 = vrot.slane %v782, 1
        %v791 = vrot.slane %v783, 1
        %v792 = vrot.slane %v784, 1
        %vm793 = vcmp.lt.s32.totalorder %v351, 7
        %v794 = vsel %vm793, %v791, %v792
        %v795 = vsel %vm793, %v790, %v791
        %v796 = vsel %vm793, %v789, %v790
        %v797 = vsel %vm793, %v788, %v789
        %v798 = vsel %vm793, %v787, %v788
        %v799 = vsel %vm793, %v786, %v787
        %v800 = vsel %vm793, %v785, %v786
        %v801 = vsel %vm793, %v792, %v785
        %v802 = vsel %vm463, 1, 0
        %v803 = vsel %vm464, 1, 0
        %v804 = vsel %vm465, 1, 0
        %v805 = vsel %vm466, 1, 0
        %v806 = vsel %vm467, 1, 0
        %v807 = vsel %vm468, 1, 0
        %v808 = vsel %vm469, 1, 0
        %v809 = vsel %vm470, 1, 0
        %vm810 = vcmp.eq.s32.totalorder %v802, 1
        %vm811 = vcmp.eq.s32.totalorder %v803, 1
        %vm812 = vcmp.eq.s32.totalorder %v804, 1
        %vm813 = vcmp.eq.s32.totalorder %v805, 1
        %vm814 = vcmp.eq.s32.totalorder %v806, 1
        %vm815 = vcmp.eq.s32.totalorder %v807, 1
        %vm816 = vcmp.eq.s32.totalorder %v808, 1
        %vm817 = vcmp.eq.s32.totalorder %v809, 1
        %v818 = vsel %vm810, %v800, 0.0
        %v819 = vsel %vm811, %v799, 0.0
        %v820 = vsel %vm812, %v798, 0.0
        %v821 = vsel %vm813, %v797, 0.0
        %v822 = vsel %vm814, %v796, 0.0
        %v823 = vsel %vm815, %v795, 0.0
        %v824 = vsel %vm816, %v794, 0.0
        %v825 = vsel %vm817, %v801, 0.0
        %v826 = vadd.f32 %v734, %v818
        %v827 = vadd.f32 %v735, %v819
        %v828 = vadd.f32 %v736, %v820
        %v829 = vadd.f32 %v737, %v821
        %v830 = vadd.f32 %v738, %v822
        %v831 = vadd.f32 %v739, %v823
        %v832 = vadd.f32 %v740, %v824
        %v833 = vadd.f32 %v741, %v825
        %v835 = vperm.slane %v473, 0
        %v837 = vadd.f32 %v826, %v835
        %v838 = vadd.f32 %v827, %v835
        %v839 = vadd.f32 %v828, %v835
        %v840 = vadd.f32 %v829, %v835
        %v841 = vadd.f32 %v830, %v835
        %v842 = vadd.f32 %v831, %v835
        %v843 = vadd.f32 %v832, %v835
        %v844 = vadd.f32 %v833, %v835
        %v845 = vmul.f32 %v837, %v837
        %v846 = vmul.f32 %v838, %v838
        %v847 = vmul.f32 %v839, %v839
        %v848 = vmul.f32 %v840, %v840
        %v849 = vmul.f32 %v841, %v841
        %v850 = vmul.f32 %v842, %v842
        %v851 = vmul.f32 %v843, %v843
        %v852 = vmul.f32 %v844, %v844
        %v853 = vmul.f32 %v837, %v845
        %v854 = vmul.f32 %v838, %v846
        %v855 = vmul.f32 %v839, %v847
        %v856 = vmul.f32 %v840, %v848
        %v857 = vmul.f32 %v841, %v849
        %v858 = vmul.f32 %v842, %v850
        %v859 = vmul.f32 %v843, %v851
        %v860 = vmul.f32 %v844, %v852
        %v861 = vmul.f32 %v853, 0.044715
        %v862 = vmul.f32 %v854, 0.044715
        %v863 = vmul.f32 %v855, 0.044715
        %v864 = vmul.f32 %v856, 0.044715
        %v865 = vmul.f32 %v857, 0.044715
        %v866 = vmul.f32 %v858, 0.044715
        %v867 = vmul.f32 %v859, 0.044715
        %v868 = vmul.f32 %v860, 0.044715
        %v869 = vadd.f32 %v837, %v861
        %v870 = vadd.f32 %v838, %v862
        %v871 = vadd.f32 %v839, %v863
        %v872 = vadd.f32 %v840, %v864
        %v873 = vadd.f32 %v841, %v865
        %v874 = vadd.f32 %v842, %v866
        %v875 = vadd.f32 %v843, %v867
        %v876 = vadd.f32 %v844, %v868
        %v877 = vmul.f32 %v869, 0.7978846
        %v878 = vmul.f32 %v870, 0.7978846
        %v879 = vmul.f32 %v871, 0.7978846
        %v880 = vmul.f32 %v872, 0.7978846
        %v881 = vmul.f32 %v873, 0.7978846
        %v882 = vmul.f32 %v874, 0.7978846
        %v883 = vmul.f32 %v875, 0.7978846
        %v884 = vmul.f32 %v876, 0.7978846
        %v885 = vtanh.pop %v877
        %v886 = vtanh.pop %v878
        %v887 = vtanh.pop %v879
        %v888 = vtanh.pop %v880
        %v889 = vtanh.pop %v881
        %v890 = vtanh.pop %v882
        %v891 = vtanh.pop %v883
        %v892 = vtanh.pop %v884
        %v893 = vadd.f32 %v885, 1.0
        %v894 = vadd.f32 %v886, 1.0
        %v895 = vadd.f32 %v887, 1.0
        %v896 = vadd.f32 %v888, 1.0
        %v897 = vadd.f32 %v889, 1.0
        %v898 = vadd.f32 %v890, 1.0
        %v899 = vadd.f32 %v891, 1.0
        %v900 = vadd.f32 %v892, 1.0
        %v901 = vmul.f32 %v893, 0.5
        %v902 = vmul.f32 %v894, 0.5
        %v903 = vmul.f32 %v895, 0.5
        %v904 = vmul.f32 %v896, 0.5
        %v905 = vmul.f32 %v897, 0.5
        %v906 = vmul.f32 %v898, 0.5
        %v907 = vmul.f32 %v899, 0.5
        %v908 = vmul.f32 %v900, 0.5
        %v909 = vmul.f32 %v837, %v901
        %v910 = vmul.f32 %v838, %v902
        %v911 = vmul.f32 %v839, %v903
        %v912 = vmul.f32 %v840, %v904
        %v913 = vmul.f32 %v841, %v905
        %v914 = vmul.f32 %v842, %v906
        %v915 = vmul.f32 %v843, %v907
        %v916 = vmul.f32 %v844, %v908
        %v917 = vpack.c.bf16 %v909, %v909
        %v918 = vpack.c.bf16 %v910, %v910
        %v919 = vpack.c.bf16 %v911, %v911
        %v920 = vpack.c.bf16 %v912, %v912
        %v921 = vpack.c.bf16 %v913, %v913
        %v922 = vpack.c.bf16 %v914, %v914
        %v923 = vpack.c.bf16 %v915, %v915
        %v924 = vpack.c.bf16 %v916, %v916
        %925 = vst [vmem:[#allocation3] sm:$0xf] %v917
        %926 = vst [vmem:[#allocation3 + $0x4] sm:$0xf] %v918
        %927 = vst [vmem:[#allocation3 + $0x8] sm:$0xf] %v919
        %928 = vst [vmem:[#allocation3 + $0xc] sm:$0xf] %v920
        %929 = vst [vmem:[#allocation3 + $0x10] sm:$0xf] %v921
        %930 = vst [vmem:[#allocation3 + $0x14] sm:$0xf] %v922
        %931 = vst [vmem:[#allocation3 + $0x18] sm:$0xf] %v923
        %932 = vst [vmem:[#allocation3 + $0x1c] sm:$0xf] %v924
        %v933 = vld [vmem:[#allocation3] sm:$0xf]
        %v934 = vld [vmem:[#allocation3 + $0x4] sm:$0xf]
        %v935 = vld [vmem:[#allocation3 + $0x8] sm:$0xf]
        %v936 = vld [vmem:[#allocation3 + $0xc] sm:$0xf]
        %v937 = vld [vmem:[#allocation3 + $0x10] sm:$0xf]
        %v938 = vld [vmem:[#allocation3 + $0x14] sm:$0xf]
        %v939 = vld [vmem:[#allocation3 + $0x18] sm:$0xf]
        %v940 = vld [vmem:[#allocation3 + $0x1c] sm:$0xf]
        %v942 = vperm.slane %v475, 0
        %v952 = vunpack.c.l.b16 %v933
        %v953 = vunpack.c.l.b16 %v934
        %v954 = vunpack.c.l.b16 %v935
        %v955 = vunpack.c.l.b16 %v936
        %v956 = vunpack.c.l.b16 %v937
        %v957 = vunpack.c.l.b16 %v938
        %v958 = vunpack.c.l.b16 %v939
        %v959 = vunpack.c.l.b16 %v940
        %v960 = vpack.c.b16 %v953, %v952
        %v961 = vpack.c.b16 %v955, %v954
        %v962 = vpack.c.b16 %v957, %v956
        %v963 = vpack.c.b16 %v959, %v958
        %v984 = vunpack.c.l.b16 %v484
        %v985 = vunpack.c.l.b16 %v485
        %v986 = vunpack.c.l.b16 %v486
        %v987 = vunpack.c.l.b16 %v487
        %v988 = vunpack.c.l.b16 %v488
        %v989 = vunpack.c.l.b16 %v489
        %v990 = vunpack.c.l.b16 %v490
        %v991 = vunpack.c.l.b16 %v491
        %v992 = vunpack.c.l.b16 %v492
        %v993 = vunpack.c.l.b16 %v493
        %v994 = vunpack.c.l.b16 %v494
        %v995 = vunpack.c.l.b16 %v495
        %v996 = vunpack.c.l.b16 %v496
        %v997 = vunpack.c.l.b16 %v497
        %v998 = vunpack.c.l.b16 %v498
        %v999 = vunpack.c.l.b16 %v499
        %v1000 = vpack.c.b16 %v985, %v984
        %v1001 = vpack.c.b16 %v987, %v986
        %v1002 = vpack.c.b16 %v989, %v988
        %v1003 = vpack.c.b16 %v991, %v990
        %v1004 = vpack.c.b16 %v993, %v992
        %v1005 = vpack.c.b16 %v995, %v994
        %v1006 = vpack.c.b16 %v997, %v996
        %v1007 = vpack.c.b16 %v999, %v998
        %1016 = vmatpush.bf16.msra.mxu0 %v1007
        %1017 = vmatpush.bf16.msra.mxu0 %v1006
        %1018 = vmatpush.bf16.msra.mxu0 %v1005
        %1019 = vmatpush.bf16.msra.mxu0 %v1004
        %1020 = vmatpush.bf16.msra.mxu0 %v1003
        %1021 = vmatpush.bf16.msra.mxu0 %v1002
        %1022 = vmatpush.bf16.msra.mxu0 %v1001
        %1023 = vmatpush.bf16.msra.mxu0 %v1000
        %1024 = vmatmul.bf16.gmra.mxu0 %v960
        %v1025 = vpop.f32.mrf.mxu0
        %v1026 = vadd.f32 %v942, %v1025
        %v1027 = vpop.f32.mrf.mxu0
        %v1028 = vadd.f32 %v942, %v1027
        %1029 = vmatmul.bf16.gmra.mxu0 %v961
        %v1030 = vpop.f32.mrf.mxu0
        %v1031 = vadd.f32 %v942, %v1030
        %v1032 = vpop.f32.mrf.mxu0
        %v1033 = vadd.f32 %v942, %v1032
        %1034 = vmatmul.bf16.gmra.mxu0 %v962
        %v1035 = vpop.f32.mrf.mxu0
        %v1036 = vadd.f32 %v942, %v1035
        %v1037 = vpop.f32.mrf.mxu0
        %v1038 = vadd.f32 %v942, %v1037
        %1039 = vmatmul.bf16.gmra.mxu0 %v963
        %v1040 = vpop.f32.mrf.mxu0
        %v1041 = vadd.f32 %v942, %v1040
        %v1042 = vpop.f32.mrf.mxu0
        %v1043 = vadd.f32 %v942, %v1042
        %1044 = vdwg.mxu0
        %1045 = vst [vmem:[%s348] sm:$0xff] %v1026
        %1046 = vst [vmem:[%s348 + $0x8] sm:$0xff] %v1028
        %1047 = vst [vmem:[%s348 + $0x10] sm:$0xff] %v1031
        %1048 = vst [vmem:[%s348 + $0x18] sm:$0xff] %v1033
        %1049 = vst [vmem:[%s348 + $0x20] sm:$0xff] %v1036
        %1050 = vst [vmem:[%s348 + $0x28] sm:$0xff] %v1038
        %1051 = vst [vmem:[%s348 + $0x30] sm:$0xff] %v1041
        %1052 = vst [vmem:[%s348 + $0x38] sm:$0xff] %v1043
        %s1053 = sand.u32 %s186, 1
        %s1054 = scalar_lea.sflag [#allocation6], %s1053
        %s1055 = sand.u32 %s186, 1
        %s1056 = smul.addr %s1055, 64
        %s1057 = scalar_lea.vmem [#allocation12], %s1056
        // Predicated region
        $region65: #{tpu_custom_call.1} parent=47 // pred_check
          %p1058 = pneg %p196
        $region66: #{tpu_custom_call.1} parent=47 // pred_check_branch
          %1060 = sbr.rel (%p1058) target = $region68
        $region67: #{tpu_custom_call.1} parent=47 // pred_region
          %1062 = vsyncadd %s1054, 0
          %s1063 = smul.addr %s26, 8
          %s1064 = smul.addr %s1063, 8
          %s1065 = scalar_lea.hbm %s7, %s1064
          %s1066 = sshll.u32 %s1057, 4
          %s1067 = int_to_ptr.vmem [resolvable:$true] %s1066
          %s1068 = sshll.u32 %s1065, 4
          %s1069 = int_to_ptr.hbm [resolvable:$true] %s1068
          %1074 = dma.vmem_to_hbm [thread:$0]  %s1067, 1024, %s1069, %s1054, 128, 128, 8
        $region68: #{tpu_custom_call.1} parent=47 // pred_fallthru
          _
      $region48: #{tpu_custom_call.1} parent=5 // pred_fallthru
        _
      %p1075 = scmp.le.s32.totalorder 2, %s21
      // Predicated region
      $region69: #{tpu_custom_call.1} parent=5 // pred_check
        %p1076 = pneg %p1075
      $region70: #{tpu_custom_call.1} parent=5 // pred_check_branch
        %1078 = sbr.rel (%p1076) target = $region72
      $region71: #{tpu_custom_call.1} parent=5 // pred_region
        %s1079 = ssub.s32 %s21, 2
        // Predicated region
        $region73: #{tpu_custom_call.1} parent=71 // pred_check
          %p1080 = pneg %p202
        $region74: #{tpu_custom_call.1} parent=71 // pred_check_branch
          %1082 = sbr.rel (%p1080) target = $region76
        $region75: #{tpu_custom_call.1} parent=71 // pred_region
          %s1083 = sand.u32 %s187, 1
          %s1084 = scalar_lea.sflag [#allocation6], %s1083
          %s1085 = sand.u32 %s187, 1
          %s1086 = smul.addr %s1085, 64
          %s1087 = scalar_lea.vmem [#allocation12], %s1086
          %1089 = dma.done %s1084, 1024
        $region76: #{tpu_custom_call.1} parent=71 // pred_fallthru
          _
      $region72: #{tpu_custom_call.1} parent=5 // pred_fallthru
        _
    $region6: #{tpu_custom_call.1} parent=1 // loop_footer
      %s25 = sadd.s32 1, %s21
    $region7: #{tpu_custom_call.1} parent=1 // loop_footer_branch
      %20 = sbr.rel target = $region3
    $region8: #{tpu_custom_call.1} parent=1 // loop_exit
      _
    %1090 = vsyncpa [#allocation5], 1
    %s1091 = scalar_lea.sflag [#allocation5], 1
    %1092 = vsyncpa %s1091, 1
    %1093 = vsyncpa [#allocation8], 1
    %1094 = vsyncpa [#allocation11], 1
    %1095 = vsyncpa [#allocation6], 1
    %s1096 = scalar_lea.sflag [#allocation6], 1
    %1097 = vsyncpa %s1096, 1

</llo_original>
